<compile_context>
chip_gen: v5e
topology: v5e:2x2
jax: 0.10.0
libtpu: 0.0.40
codegen_flags: <defaults>
</compile_context>

<pallas_src>
import math

import jax
import jax.numpy as jnp
from jax.experimental import pallas as pl
from jax.experimental.pallas import tpu as pltpu


def _round_up(x, m):
    return ((x + m - 1) // m) * m


def _largest_divisor_tile(dim_pad, max_tile, align):
    """Largest multiple of `align` that is <= max_tile and divides dim_pad."""
    t = min(max_tile, dim_pad)
    t -= t % align
    t = max(t, align)
    while dim_pad % t:
        t -= align
    return t


def _chip_config():
    """Per-generation tile caps and VMEM limit."""
    vmem_bytes = 128 * 1024 * 1024
    try:
        info = pltpu.get_tpu_info()
        vmem_bytes = int(getattr(info, "vmem_capacity_bytes", vmem_bytes))
    except Exception:
        pass
    if vmem_bytes <= 64 * 1024 * 1024:
        # v7x-class: 64 MiB VMEM per TensorCore -> keep working set well under it.
        return dict(tm_max=512, tn_max=512, tk_max=1024,
                    vmem_limit_bytes=48 * 1024 * 1024)
    # v5e / v6e: 128 MiB VMEM -> larger tiles to get off the HBM roofline.
    return dict(tm_max=1024, tn_max=1024, tk_max=1024,
                vmem_limit_bytes=64 * 1024 * 1024)


def _split_for_megacore(B, tm, tn, n_pad):
    """Guarantee >=2 blocks along a parallel axis so both v7x TCs get work."""
    m_pad = _round_up(B, tm)
    if (m_pad // tm) * (n_pad // tn) >= 2:
        return tm, tn
    half_m = tm // 2
    if half_m >= 8 and half_m % 8 == 0 and B > half_m:
        return half_m, tn
    half_n = tn // 2
    if half_n >= 128 and half_n % 128 == 0 and n_pad % half_n == 0 and n_pad // half_n >= 2:
        return tm, half_n
    return tm, tn


def _linear_sigmoid_kernel(x_ref, wt_ref, b_ref, o_ref, acc_ref):
    """One (tm, tn) output tile; K is the innermost reduction grid axis.

    x_ref  : (tm, tk)  activation tile
    wt_ref : (tk, tn)  pre-transposed weight tile (n_inputs, n_targets layout)
    b_ref  : (1,  tn)  bias tile
    o_ref  : (tm, tn)  output tile
    acc_ref: (tm, tn)  f32 accumulator, resident across the K grid axis
    """
    k = pl.program_id(2)

    @pl.when(k == 0)
    def _():
        acc_ref[...] = jnp.zeros_like(acc_ref)

    # Canonical contraction on the MXU: (tm, tk) @ (tk, tn) — no transpose.
    acc_ref[...] += jnp.dot(
        x_ref[...], wt_ref[...], preferred_element_type=jnp.float32
    )

    # Epilogue once per output tile: bias add on the VPU, exp on the EUP.
    @pl.when(k == pl.num_programs(2) - 1)
    def _():
        acc = acc_ref[...] + b_ref[...].astype(jnp.float32)
        o_ref[...] = jax.nn.sigmoid(acc).astype(o_ref.dtype)


def prepare_linear_params(weight, bias):
    """One-time parameter prep (amortizes to ~0 for a reused layer).

    weight : (n_targets, n_inputs)  -- PyTorch nn.Linear layout
    bias   : (n_targets,)
    Returns (weight_t_padded (k_pad, n_pad), bias_padded (1, n_pad)).
    """
    n_out, n_in = weight.shape
    k_pad = _round_up(n_in, 128)
    n_pad = _round_up(n_out, 128)
    wt = jnp.asarray(weight).T  # (n_in, n_out)
    if (k_pad, n_pad) != (n_in, n_out):
        wt = jnp.pad(wt, ((0, k_pad - n_in), (0, n_pad - n_out)))
    b2d = jnp.asarray(bias).reshape(1, n_out)
    if n_pad != n_out:
        b2d = jnp.pad(b2d, ((0, 0), (0, n_pad - n_out)))
    return wt, b2d


def linear_sigmoid(x, weight_t_pad, bias_pad, *, n_out,
                   tm_max=None, tn_max=None, tk_max=None,
                   vmem_limit_bytes=None):
    """y = sigmoid(x @ W.T + b) with pre-prepared (transposed+padded) params.

    x            : (B, n_inputs)
    weight_t_pad : (k_pad, n_pad)  from prepare_linear_params
    bias_pad     : (1, n_pad)      from prepare_linear_params
    n_out        : original n_targets (static), used to slice the output
    """
    B, n_in = x.shape
    k_pad, n_pad = weight_t_pad.shape
    assert n_in <= k_pad and k_pad - n_in < 128, "weight/input feature mismatch"
    assert n_out <= n_pad

    cfg = _chip_config()
    tm_max = cfg["tm_max"] if tm_max is None else tm_max
    tn_max = cfg["tn_max"] if tn_max is None else tn_max
    tk_max = cfg["tk_max"] if tk_max is None else tk_max
    vmem_limit_bytes = (cfg["vmem_limit_bytes"] if vmem_limit_bytes is None
                        else vmem_limit_bytes)

    # M tile: capped by (8-aligned) batch. N/K tiles: largest divisor of the
    # 128-aligned dim so no extra zero columns/rows of W are streamed.
    tm = min(tm_max, _round_up(B, 8))
    tn = _largest_divisor_tile(n_pad, tn_max, 128)
    tk = _largest_divisor_tile(k_pad, tk_max, 128)
    tm, tn = _split_for_megacore(B, tm, tn, n_pad)
    m_pad = _round_up(B, tm)

    # Only the activation is padded per call (parameters were padded once).
    if (m_pad, k_pad) != (B, n_in):
        x = jnp.pad(x, ((0, m_pad - B), (0, k_pad - n_in)))

    grid = (m_pad // tm, n_pad // tn, k_pad // tk)

    itemsize = jnp.dtype(x.dtype).itemsize
    cost = pl.CostEstimate(
        flops=2 * m_pad * n_pad * k_pad,
        transcendentals=m_pad * n_pad,
        bytes_accessed=(m_pad * k_pad + k_pad * n_pad + n_pad
                        + m_pad * n_pad) * itemsize,
    )

    out = pl.pallas_call(
        _linear_sigmoid_kernel,
        out_shape=jax.ShapeDtypeStruct((m_pad, n_pad), x.dtype),
        grid=grid,
        in_specs=[
            pl.BlockSpec((tm, tk), lambda i, j, k: (i, k)),   # x
            pl.BlockSpec((tk, tn), lambda i, j, k: (k, j)),   # W.T (in, out)
            pl.BlockSpec((1, tn), lambda i, j, k: (0, j)),    # bias
        ],
        out_specs=pl.BlockSpec((tm, tn), lambda i, j, k: (i, j)),
        scratch_shapes=[pltpu.VMEM((tm, tn), jnp.float32)],
        compiler_params=pltpu.CompilerParams(
            dimension_semantics=("parallel", "parallel", "arbitrary"),
            vmem_limit_bytes=vmem_limit_bytes,
        ),
        cost_estimate=cost,
    )(x, weight_t_pad, bias_pad)

    if (m_pad, n_pad) != (B, n_out):
        out = out[:B, :n_out]
    return out


def init_linear_params(key, n_inputs, n_targets, dtype=jnp.float32):
    # Mirrors torch.nn.Linear default init: U(-1/sqrt(fan_in), 1/sqrt(fan_in)).
    kw, kb = jax.random.split(key)
    bound = 1.0 / math.sqrt(n_inputs)
    weight = jax.random.uniform(
        kw, (n_targets, n_inputs), dtype=dtype, minval=-bound, maxval=bound
    )
    bias = jax.random.uniform(
        kb, (n_targets,), dtype=dtype, minval=-bound, maxval=bound
    )
    return weight, bias


if __name__ == "__main__":
    key = jax.random.PRNGKey(0)
    k_x, k_p, k_x2, k_p2 = jax.random.split(key, 4)

    fwd = jax.jit(
        linear_sigmoid,
        static_argnames=("n_out", "tm_max", "tn_max", "tk_max",
                         "vmem_limit_bytes"),
    )

    # Small demo shape (module forward: (B, n_inputs) -> (B, n_targets)).
    batch, n_inputs, n_targets = 8, 32, 16
    x = jax.random.normal(k_x, (batch, n_inputs), dtype=jnp.float32)
    weight, bias = init_linear_params(k_p, n_inputs, n_targets)
    wt_pad, b_pad = prepare_linear_params(weight, bias)

    out = jax.block_until_ready(fwd(x, wt_pad, b_pad, n_out=n_targets))
    ref = jax.nn.sigmoid(x @ weight.T + bias)
    assert out.shape == (batch, n_targets)
    assert jnp.allclose(out, ref, atol=1e-5, rtol=1e-5)

    # Second check: unaligned dims + small tiles so the multi-block grid,
    # K-accumulator path and padded-slice path are all exercised.
    b2, i2, o2 = 200, 300, 260
    x2 = jax.random.normal(k_x2, (b2, i2), dtype=jnp.float32)
    w2, bias2 = init_linear_params(k_p2, i2, o2)
    wt2_pad, b2_pad = prepare_linear_params(w2, bias2)
    out2 = jax.block_until_ready(
        fwd(x2, wt2_pad, b2_pad, n_out=o2, tm_max=64, tn_max=128, tk_max=128)
    )
    ref2 = jax.nn.sigmoid(x2 @ w2.T + bias2)
    assert out2.shape == (b2, o2)
    assert jnp.allclose(out2, ref2, atol=2e-5, rtol=1e-5)

    print("KERNEL_OK")
</pallas_src>

<mosaic_0001>
module attributes {stable_mosaic.version = 11 : i64} {
  func.func @_linear_sigmoid_kernel(%arg0: i32, %arg1: i32, %arg2: i32, %arg3: memref<8x128xf32, #tpu.memory_space<vmem>>, %arg4: memref<128x128xf32, #tpu.memory_space<vmem>>, %arg5: memref<1x128xf32, #tpu.memory_space<vmem>>, %arg6: memref<8x128xf32, #tpu.memory_space<vmem>>, %arg7: memref<8x128xf32, #tpu.memory_space<vmem>>) attributes {dimension_semantics = [#tpu.dimension_semantics<parallel>, #tpu.dimension_semantics<parallel>, #tpu.dimension_semantics<arbitrary>], iteration_bounds = array<i64: 1, 1, 1>, scalar_prefetch = 0 : i64, scratch_operands = 1 : i64, tpu.core_type = #tpu.core_type<tc>, window_params = [{transform_indices = @transform_0, window_bounds = array<i64: 8, 128>}, {transform_indices = @transform_1, window_bounds = array<i64: 128, 128>}, {transform_indices = @transform_2, window_bounds = array<i64: 1, 128>}, {transform_indices = @transform_3, window_bounds = array<i64: 8, 128>}]} {
    %c0_i32 = arith.constant 0 : i32
    %0 = arith.cmpi eq, %arg2, %c0_i32 : i32
    %1 = arith.extui %0 : i1 to i32
    %c0_i32_0 = arith.constant 0 : i32
    %2 = arith.cmpi ne, %1, %c0_i32_0 : i32
    scf.if %2 {
      %cst_10 = arith.constant 0.000000e+00 : f32
      %12 = vector.broadcast %cst_10 : f32 to vector<8x128xf32>
      %c0_11 = arith.constant 0 : index
      %c0_12 = arith.constant 0 : index
      %13 = vector.load %arg7[%c0_11, %c0_12] : memref<8x128xf32, #tpu.memory_space<vmem>>, vector<8x128xf32>
      tpu.vector_store %arg7[%c0_11, %c0_12], %12 {strides = array<i32>} : memref<8x128xf32, #tpu.memory_space<vmem>>, vector<8x128xf32>,
    } else {
    }
    %c0 = arith.constant 0 : index
    %c0_1 = arith.constant 0 : index
    %3 = vector.load %arg7[%c0, %c0_1] : memref<8x128xf32, #tpu.memory_space<vmem>>, vector<8x128xf32>
    %c0_2 = arith.constant 0 : index
    %c0_3 = arith.constant 0 : index
    %4 = vector.load %arg3[%c0_2, %c0_3] : memref<8x128xf32, #tpu.memory_space<vmem>>, vector<8x128xf32>
    %c0_4 = arith.constant 0 : index
    %c0_5 = arith.constant 0 : index
    %5 = vector.load %arg4[%c0_4, %c0_5] : memref<128x128xf32, #tpu.memory_space<vmem>>, vector<128x128xf32>
    %cst = arith.constant dense<0.000000e+00> : vector<8x128xf32>
    %6 = tpu.matmul %4, %5, %cst {dimension_numbers = #tpu.dot_dimension_numbers<[1], [0], [0], [1], [0, 0, 1, 1], [], []>} : vector<8x128xf32>, vector<128x128xf32>, vector<8x128xf32> -> vector<8x128xf32>
    %7 = arith.addf %3, %6 : vector<8x128xf32>
    %c0_6 = arith.constant 0 : index
    %c0_7 = arith.constant 0 : index
    %8 = vector.load %arg7[%c0_6, %c0_7] : memref<8x128xf32, #tpu.memory_space<vmem>>, vector<8x128xf32>
    tpu.vector_store %arg7[%c0_6, %c0_7], %7 {strides = array<i32>} : memref<8x128xf32, #tpu.memory_space<vmem>>, vector<8x128xf32>,
    %c0_i32_8 = arith.constant 0 : i32
    %9 = arith.cmpi eq, %arg2, %c0_i32_8 : i32
    %10 = arith.extui %9 : i1 to i32
    %c0_i32_9 = arith.constant 0 : i32
    %11 = arith.cmpi ne, %10, %c0_i32_9 : i32
    scf.if %11 {
      %c0_10 = arith.constant 0 : index
      %c0_11 = arith.constant 0 : index
      %12 = vector.load %arg7[%c0_10, %c0_11] : memref<8x128xf32, #tpu.memory_space<vmem>>, vector<8x128xf32>
      %c0_12 = arith.constant 0 : index
      %c0_13 = arith.constant 0 : index
      %13 = vector.load %arg5[%c0_12, %c0_13] : memref<1x128xf32, #tpu.memory_space<vmem>>, vector<1x128xf32>
      %14 = vector.broadcast %13 : vector<1x128xf32> to vector<8x128xf32>
      %15 = arith.addf %12, %14 : vector<8x128xf32>
      %16 = arith.negf %15 : vector<8x128xf32>
      %17 = math.exp %16 : vector<8x128xf32>
      %cst_14 = arith.constant 1.000000e+00 : f32
      %18 = vector.broadcast %cst_14 : f32 to vector<8x128xf32>
      %19 = arith.addf %18, %17 : vector<8x128xf32>
      %20 = arith.divf %18, %19 : vector<8x128xf32>
      %c0_15 = arith.constant 0 : index
      %c0_16 = arith.constant 0 : index
      %21 = vector.load %arg6[%c0_15, %c0_16] : memref<8x128xf32, #tpu.memory_space<vmem>>, vector<8x128xf32>
      tpu.vector_store %arg6[%c0_15, %c0_16], %20 {strides = array<i32>} : memref<8x128xf32, #tpu.memory_space<vmem>>, vector<8x128xf32>,
    } else {
    }
    return
  }
  func.func @transform_0(%arg0: i32, %arg1: i32, %arg2: i32) -> (i32, i32) {
    %c0_i32 = arith.constant 0 : i32
    return %arg0, %arg2 : i32, i32
  }
  func.func @transform_1(%arg0: i32, %arg1: i32, %arg2: i32) -> (i32, i32) {
    %c0_i32 = arith.constant 0 : i32
    return %arg2, %arg1 : i32, i32
  }
  func.func @transform_2(%arg0: i32, %arg1: i32, %arg2: i32) -> (i32, i32) {
    %c0_i32 = arith.constant 0 : i32
    %c0_i32_0 = arith.constant 0 : i32
    return %c0_i32, %arg1 : i32, i32
  }
  func.func @transform_3(%arg0: i32, %arg1: i32, %arg2: i32) -> (i32, i32) {
    %c0_i32 = arith.constant 0 : i32
    return %arg0, %arg1 : i32, i32
  }
}

</mosaic_0001>

<llo_original>
// kernel: linear_sigmoid.1
$region0: #{linear_sigmoid.1}
  #allocation0 [shape = 'u32[]', space=smem, size = 0x4, offset = 0x4, fixed_abs, tag = 'smem constant byte address 0x4 - core index']
  #allocation1 [shape = 'u32[72,128]{1,0:T(1,128)}', space=vmem, size = 0x9000, scoped, tag = 'internal scratch']
  #allocation2 [shape = 'f32[8,128]{1,0:T(8,128)}', space=vmem, size = 0x1000, scoped, tag = 'scratch operand']
  %s0 = inlined_call_operand.vmem [shape: f32[8,128], index: 0, kind: input, shape index: {}]
  %s1 = inlined_call_operand.hbm [shape: f32[128,128], index: 1, kind: input, shape index: {}]
  %s2 = inlined_call_operand.vmem [shape: f32[1,128], index: 2, kind: input, shape index: {}]
  %s3 = inlined_call_operand.hbm [shape: f32[8,128], index: 3, kind: output, shape index: {}]
  %s4 = sld [smem:[#allocation0]]
  $region34: #{linear_sigmoid.1} parent=0
    _
  %s6 = ssub.s32 1, %s4
  %s7 = scalar_select 0, %s6, %s4
  $region1: #{linear_sigmoid.1} parent=0
    #allocation3 [shape = 'u8[65536]{0}', space=vmem, size = 0x10000, scoped, tag = 'input window, operand 1, single buffered']
    #allocation4 [shape = 's32[1]{0}', space=sflag, size = 0x4, scoped, tag = 'scoped memory for linear_sigmoid.1']
    #allocation5 [shape = 's32[1]{0}', space=sflag, size = 0x4, scoped, tag = 'scoped memory for linear_sigmoid.1']
    #allocation6 [shape = 'u8[4096]{0}', space=vmem, size = 0x1000, scoped, tag = 'output window, operand 0, single buffered']
    %8 = vsyncpa [#allocation4], 0
    %9 = vsyncpa [#allocation5], 0
    // Predicated region
    $region2: #{linear_sigmoid.1} parent=1 // pred_check
      _
    $region3: #{linear_sigmoid.1} parent=1 // pred_check_branch
      %11 = sbr.rel (0) target = $region5
    $region4: #{linear_sigmoid.1} parent=1 // pred_region
      _
    $region5: #{linear_sigmoid.1} parent=1 // pred_fallthru
      _
    // Predicated region
    $region6: #{linear_sigmoid.1} parent=1 // pred_check
      _
    $region7: #{linear_sigmoid.1} parent=1 // pred_check_branch
      %13 = sbr.rel (0) target = $region9
    $region8: #{linear_sigmoid.1} parent=1 // pred_region
      %15 = vsyncadd [#allocation4], 0
      %s16 = sshll.u32 %s1, 4
      %s17 = int_to_ptr.hbm [resolvable:$true] %s16
      %s18 = sshll.u32 [#allocation3], 4
      %s19 = int_to_ptr.vmem [resolvable:$true] %s18
      %24 = dma.hbm_to_vmem [thread:$0]  %s17, 2048, %s19, [#allocation4], 128, 128, 8
    $region9: #{linear_sigmoid.1} parent=1 // pred_fallthru
      _
    // Predicated region
    $region10: #{linear_sigmoid.1} parent=1 // pred_check
      _
    $region11: #{linear_sigmoid.1} parent=1 // pred_check_branch
      %26 = sbr.rel (0) target = $region13
    $region12: #{linear_sigmoid.1} parent=1 // pred_region
      _
    $region13: #{linear_sigmoid.1} parent=1 // pred_fallthru
      _
    // Predicated region
    $region14: #{linear_sigmoid.1} parent=1 // pred_check
      _
    $region15: #{linear_sigmoid.1} parent=1 // pred_check_branch
      %28 = sbr.rel (0) target = $region17
    $region16: #{linear_sigmoid.1} parent=1 // pred_region
      %30 = dma.done [#allocation4], 2048
    $region17: #{linear_sigmoid.1} parent=1 // pred_fallthru
      _
    %p31 = scmp.eq.s32.totalorder 0, 0
    // Predicated region
    $region18: #{linear_sigmoid.1} parent=1 // pred_check
      %p32 = pneg %p31
    $region19: #{linear_sigmoid.1} parent=1 // pred_check_branch
      %34 = sbr.rel (%p32) target = $region21
    $region20: #{linear_sigmoid.1} parent=1 // pred_region
      %35 = vst [vmem:[#allocation2] sm:$0xff] 0.0
    $region21: #{linear_sigmoid.1} parent=1 // pred_fallthru
      _
    %v36 = vld [vmem:[#allocation2] sm:$0xff]
    %v37 = vld [vmem:[%s0] sm:$0xff]
    %v38 = vld [vmem:[#allocation3] sm:$0xff]
    %v39 = vld [vmem:[#allocation3 + $0x8] sm:$0xff]
    %v40 = vld [vmem:[#allocation3 + $0x10] sm:$0xff]
    %v41 = vld [vmem:[#allocation3 + $0x18] sm:$0xff]
    %v42 = vld [vmem:[#allocation3 + $0x20] sm:$0xff]
    %v43 = vld [vmem:[#allocation3 + $0x28] sm:$0xff]
    %v44 = vld [vmem:[#allocation3 + $0x30] sm:$0xff]
    %v45 = vld [vmem:[#allocation3 + $0x38] sm:$0xff]
    %v46 = vld [vmem:[#allocation3 + $0x40] sm:$0xff]
    %v47 = vld [vmem:[#allocation3 + $0x48] sm:$0xff]
    %v48 = vld [vmem:[#allocation3 + $0x50] sm:$0xff]
    %v49 = vld [vmem:[#allocation3 + $0x58] sm:$0xff]
    %v50 = vld [vmem:[#allocation3 + $0x60] sm:$0xff]
    %v51 = vld [vmem:[#allocation3 + $0x68] sm:$0xff]
    %v52 = vld [vmem:[#allocation3 + $0x70] sm:$0xff]
    %v53 = vld [vmem:[#allocation3 + $0x78] sm:$0xff]
    %54 = vmatpush.msra.mxu0 %v53
    %55 = vmatpush.msra.mxu0 %v52
    %56 = vmatpush.msra.mxu0 %v51
    %57 = vmatpush.msra.mxu0 %v50
    %58 = vmatpush.msra.mxu0 %v49
    %59 = vmatpush.msra.mxu0 %v48
    %60 = vmatpush.msra.mxu0 %v47
    %61 = vmatpush.msra.mxu0 %v46
    %62 = vmatpush.msra.mxu0 %v45
    %63 = vmatpush.msra.mxu0 %v44
    %64 = vmatpush.msra.mxu0 %v43
    %65 = vmatpush.msra.mxu0 %v42
    %66 = vmatpush.msra.mxu0 %v41
    %67 = vmatpush.msra.mxu0 %v40
    %68 = vmatpush.msra.mxu0 %v39
    %69 = vmatpush.msra.mxu0 %v38
    %70 = vmatmul.f32.gmra.mxu0 %v37
    %v71 = vpop.f32.mrf.mxu0
    %v72 = vadd.f32 0.0, %v71
    %73 = vdwg.mxu0
    %v74 = vadd.f32 %v36, %v72
    %75 = vst [vmem:[#allocation2] sm:$0xff] %v74
    // Predicated region
    $region22: #{linear_sigmoid.1} parent=1 // pred_check
      %p76 = pneg %p31
    $region23: #{linear_sigmoid.1} parent=1 // pred_check_branch
      %78 = sbr.rel (%p76) target = $region25
    $region24: #{linear_sigmoid.1} parent=1 // pred_region
      %v79 = vld [vmem:[#allocation2] sm:$0xff]
      %v80 = vld [vmem:[%s2] sm:$0x1]
      %v82 = vperm.slane %v80, 0
      %v84 = vadd.f32 %v79, %v82
      %v85 = vxor.u32 %v84, 2147483648
      %v86 = vmul.f32 %v85, 1.442695
      %v87 = vpow.pop %v86
      %v88 = vadd.f32 %v87, 1.0
      %v89 = vrcp.pop %v88
      %v90 = vmul.f32 %v88, %v89
      %v91 = vsub.f32 1.0, %v90
      %v92 = vmul.f32 %v89, %v91
      %v93 = vadd.f32 %v89, %v92
      %vm94 = vweird.f32 %v88
      %vm95 = vweird.f32 %v89
      %vm96 = vmor %vm94, %vm95
      %v97 = vsel %vm96, %v89, %v93
      %v98 = vand.u32 2147483647, %v88
      %vm99 = vcmp.eq.f32.partialorder %v98, 8.507059e+37
      %v100 = vand.u32 %v88, 2147483648
      %v101 = vor.u32 1.1754944e-38, %v100
      %v102 = vsel %vm99, %v101, %v97
      %v103 = vmul.f32 1.0, %v102
      %104 = vst [vmem:[#allocation6] sm:$0xff] %v103
    $region25: #{linear_sigmoid.1} parent=1 // pred_fallthru
      _
    // Predicated region
    $region26: #{linear_sigmoid.1} parent=1 // pred_check
      _
    $region27: #{linear_sigmoid.1} parent=1 // pred_check_branch
      %106 = sbr.rel (0) target = $region29
    $region28: #{linear_sigmoid.1} parent=1 // pred_region
      %108 = vsyncadd [#allocation5], 0
      %s110 = sshll.u32 [#allocation6], 4
      %s111 = int_to_ptr.vmem [resolvable:$true] %s110
      %s112 = sshll.u32 %s3, 4
      %s113 = int_to_ptr.hbm [resolvable:$true] %s112
      %115 = dma.vmem_to_hbm [thread:$0]  %s111, 128, %s113, [#allocation5]
    $region29: #{linear_sigmoid.1} parent=1 // pred_fallthru
      _
    // Predicated region
    $region30: #{linear_sigmoid.1} parent=1 // pred_check
      _
    $region31: #{linear_sigmoid.1} parent=1 // pred_check_branch
      %117 = sbr.rel (0) target = $region33
    $region32: #{linear_sigmoid.1} parent=1 // pred_region
      %119 = dma.done [#allocation5], 128
    $region33: #{linear_sigmoid.1} parent=1 // pred_fallthru
      _
    %120 = vsyncpa [#allocation4], 1
    %121 = vsyncpa [#allocation5], 1

</llo_original>
